<compile_context>
chip_gen: v6e
topology: v6e:2x2x1
jax: 0.10.0
libtpu: 0.0.40
codegen_flags: <defaults>
</compile_context>

<pallas_src>
import functools

import jax
import jax.numpy as jnp
from jax import lax
from jax.experimental import pallas as pl
from jax.experimental.pallas import tpu as pltpu


def _class_layer3d_kernel(x_ref, w_ref, b_ref, o_ref, acc_ref, *,
                          inv_s, rem, ts, needs_mask):
    # x_ref:   (1, C, TS)      input tile (HBM dtype)
    # w_ref:   (C, K_pad)      weight (pre-transposed, native dtype)
    # b_ref:   (1, K_pad)      bias (native dtype)
    # o_ref:   (1, 1, K_pad)   output row for this batch element
    # acc_ref: (C, 1) f32      running spatial sum (scratch, sublane-major)
    s = pl.program_id(1)
    last = pl.num_programs(1) - 1

    @pl.when(s == 0)
    def _():
        acc_ref[...] = jnp.zeros_like(acc_ref)

    def _accumulate(masked):
        xv = x_ref[0]                                   # (C, TS)
        if masked:
            # Only the final ragged tile pays for the mask; lane index is
            # built as (1, TS) and broadcast over C.
            lane = lax.broadcasted_iota(jnp.int32, (1, ts), dimension=1)
            xv = jnp.where(lane < rem, xv, jnp.zeros_like(xv))
        # Widening to f32 happens inside the reduce; the (C, 1) result is the
        # lane-reduce's native layout so no per-tile relayout is needed.
        acc_ref[...] += jnp.sum(xv, axis=-1, keepdims=True, dtype=jnp.float32)

    if needs_mask:
        @pl.when(s != last)
        def _():
            _accumulate(False)          # hot path: unmasked

        @pl.when(s == last)
        def _():
            _accumulate(True)           # cold path: masked final tile
    else:
        _accumulate(False)

    @pl.when(s == last)
    def _():
        pooled = acc_ref[...] * jnp.float32(inv_s)      # (C, 1) f32 mean
        # Contract dim 0 of pooled with dim 0 of w: (C,1) x (C,K_pad) ->
        # (1,K_pad).  Weight stays in its native dtype (no f32 copy of the
        # C x K_pad block); accumulation is f32 on the MXU.
        out = lax.dot_general(
            pooled.astype(w_ref.dtype), w_ref[...],
            dimension_numbers=(((0,), (0,)), ((), ())),
            preferred_element_type=jnp.float32)
        out = out + b_ref[...]                           # promotes to f32
        o_ref[0] = out.astype(o_ref.dtype)


def _prepare_fc_params(weight, bias, k_pad):
    """Pre-transpose / pad the Linear params to a lane-dense (C, K_pad) layout.

    In a real model this runs once at init (or folds as a jit constant) so the
    per-step forward does no recurring transpose/pad of the weight.
    """
    k = weight.shape[0]
    w_t = weight.T                                       # (C, K)
    if k_pad != k:
        w_t = jnp.pad(w_t, ((0, 0), (0, k_pad - k)))
        b_p = jnp.pad(bias, (0, k_pad - k))
    else:
        b_p = bias
    return w_t, b_p.reshape(1, k_pad)


def class_layer3d(x, weight, bias, *, ts=None, out_dtype=None,
                  max_block_bytes=16 * 1024 * 1024,
                  vmem_budget_bytes=40 * 1024 * 1024):
    """x: (N, C, D, H, W); weight: (K, C) PyTorch layout; bias: (K,)."""
    N, C, D, H, W = x.shape
    K = weight.shape[0]
    S = D * H * W
    itemsize = jnp.dtype(x.dtype).itemsize
    if out_dtype is None:
        # PyTorch Linear (f32 params) returns f32 logits; follow promotion.
        out_dtype = jnp.promote_types(x.dtype, weight.dtype)

    x_flat = x.reshape(N, C, S)

    # Pad K to a lane-dense multiple of 128 (unmasked stores / clean MXU tile).
    K_pad = max(128, pl.cdiv(K, 128) * 128)
    w_t, b_p = _prepare_fc_params(weight, bias, K_pad)
    w_bytes = C * K_pad * jnp.dtype(w_t.dtype).itemsize

    # Spatial tile: largest multiple of 128 so that two in-flight x buffers
    # plus the resident weight stay inside the VMEM budget (and under the
    # per-buffer cap used to amortize per-grid-step overhead).
    if ts is None:
        per_buf = (vmem_budget_bytes - w_bytes - 2 * 1024 * 1024) // 2
        per_buf = min(per_buf, max_block_bytes)
        ts = (per_buf // max(1, C * itemsize)) // 128 * 128
        # TODO(synk): for very large C the 128-lane floor below can exceed the
        # budget; tile C as well in that case.
        ts = max(128, ts)
    if ts >= S:
        ts = S
    num_s = pl.cdiv(S, ts)
    needs_mask = (S % ts) != 0
    rem = S - (num_s - 1) * ts          # valid lanes in the final S tile

    kernel = functools.partial(
        _class_layer3d_kernel,
        inv_s=1.0 / S, rem=rem, ts=ts, needs_mask=needs_mask)

    # Explicit VMEM ceiling: actual need + slack, capped well below v7x's
    # 64 MiB physical VMEM so Mosaic internals keep headroom.
    needed = (2 * C * ts * itemsize                       # double-buffered x
              + 2 * w_bytes                               # weight buffers
              + 4 * K_pad * jnp.dtype(b_p.dtype).itemsize # bias buffers
              + 4 * K_pad * jnp.dtype(out_dtype).itemsize # out buffers
              + 4 * C)                                    # f32 accumulator
    vmem_limit = int(min(48 * 1024 * 1024,
                         max(needed + 4 * 1024 * 1024, 16 * 1024 * 1024)))

    cost = pl.CostEstimate(
        flops=N * C * S + 2 * N * C * K_pad,
        transcendentals=0,
        bytes_accessed=(N * C * S * itemsize
                        + C * K_pad * jnp.dtype(w_t.dtype).itemsize
                        + K_pad * jnp.dtype(b_p.dtype).itemsize
                        + N * K_pad * jnp.dtype(out_dtype).itemsize),
    )

    out = pl.pallas_call(
        kernel,
        out_shape=jax.ShapeDtypeStruct((N, 1, K_pad), out_dtype),
        grid_spec=pltpu.PrefetchScalarGridSpec(
            num_scalar_prefetch=0,
            grid=(N, num_s),                              # (batch, S-reduction)
            in_specs=[
                pl.BlockSpec((1, C, ts), lambda n, s: (n, 0, s)),
                pl.BlockSpec((C, K_pad), lambda n, s: (0, 0)),   # resident
                pl.BlockSpec((1, K_pad), lambda n, s: (0, 0)),   # resident
            ],
            out_specs=pl.BlockSpec((1, 1, K_pad), lambda n, s: (n, 0, 0)),
            scratch_shapes=[pltpu.VMEM((C, 1), jnp.float32)],
        ),
        compiler_params=pltpu.CompilerParams(
            dimension_semantics=("parallel", "arbitrary"),
            vmem_limit_bytes=vmem_limit),
        cost_estimate=cost,
    )(x_flat, w_t, b_p)

    return out[:, 0, :K]


if __name__ == "__main__":
    key = jax.random.PRNGKey(0)
    k_x, k_w, k_b = jax.random.split(key, 3)

    # Small shapes; S = 4*8*9 = 288 so ts=128 exercises the multi-tile
    # reduction path including the gated ragged (masked) last tile.
    N, C, D, H, W = 2, 8, 4, 8, 9
    num_classes = 10

    x = jax.random.normal(k_x, (N, C, D, H, W), dtype=jnp.float32)

    # nn.Linear default init: U(-1/sqrt(C), 1/sqrt(C)).
    bound = 1.0 / (C ** 0.5)
    weight = jax.random.uniform(k_w, (num_classes, C), minval=-bound,
                                maxval=bound, dtype=jnp.float32)
    bias = jax.random.uniform(k_b, (num_classes,), minval=-bound,
                              maxval=bound, dtype=jnp.float32)

    # Pure-JAX reference: AdaptiveAvgPool3d((1,1,1)) + flatten + Linear.
    ref = jnp.mean(x, axis=(2, 3, 4)) @ weight.T + bias

    # Multi-tile spatial reduction with a ragged (masked) final tile.
    out_tiled = jax.block_until_ready(class_layer3d(x, weight, bias, ts=128))
    # Default auto-tiling (single full-S block at these shapes).
    out_auto = jax.block_until_ready(class_layer3d(x, weight, bias))

    assert out_tiled.shape == (N, num_classes)
    assert out_auto.shape == (N, num_classes)
    assert jnp.allclose(out_tiled, ref, atol=1e-5, rtol=1e-5)
    assert jnp.allclose(out_auto, ref, atol=1e-5, rtol=1e-5)

    print("KERNEL_OK")
</pallas_src>

<mosaic_0001>
module attributes {stable_mosaic.version = 11 : i64} {
  func.func @_class_layer3d_kernel(%arg0: i32, %arg1: i32, %arg2: memref<1x8x128xf32, #tpu.memory_space<vmem>>, %arg3: memref<8x128xf32, #tpu.memory_space<vmem>>, %arg4: memref<1x128xf32, #tpu.memory_space<vmem>>, %arg5: memref<1x1x128xf32, #tpu.memory_space<vmem>>, %arg6: memref<8x1xf32, #tpu.memory_space<vmem>>) attributes {dimension_semantics = [#tpu.dimension_semantics<parallel>, #tpu.dimension_semantics<arbitrary>], iteration_bounds = array<i64: 2, 3>, scalar_prefetch = 0 : i64, scratch_operands = 1 : i64, tpu.core_type = #tpu.core_type<tc>, window_params = [{transform_indices = @transform_0, window_bounds = array<i64: 1, 8, 128>}, {pipeline_mode = #tpu.pipeline_mode<synchronous>, transform_indices = @transform_1, window_bounds = array<i64: 8, 128>}, {pipeline_mode = #tpu.pipeline_mode<synchronous>, transform_indices = @transform_2, window_bounds = array<i64: 1, 128>}, {transform_indices = @transform_3, window_bounds = array<i64: 1, 1, 128>}]} {
    %c0_i32 = arith.constant 0 : i32
    %0 = arith.cmpi eq, %arg1, %c0_i32 : i32
    %1 = arith.extui %0 : i1 to i32
    %c0_i32_0 = arith.constant 0 : i32
    %2 = arith.cmpi ne, %1, %c0_i32_0 : i32
    scf.if %2 {
      %cst = arith.constant 0.000000e+00 : f32
      %12 = vector.broadcast %cst : f32 to vector<8x1xf32>
      %c0 = arith.constant 0 : index
      %c0_6 = arith.constant 0 : index
      %13 = vector.load %arg6[%c0, %c0_6] : memref<8x1xf32, #tpu.memory_space<vmem>>, vector<8x1xf32>
      tpu.vector_store %arg6[%c0, %c0_6], %12 {strides = array<i32>} : memref<8x1xf32, #tpu.memory_space<vmem>>, vector<8x1xf32>,
    } else {
    }
    %c2_i32 = arith.constant 2 : i32
    %3 = arith.cmpi ne, %arg1, %c2_i32 : i32
    %4 = arith.extui %3 : i1 to i32
    %c0_i32_1 = arith.constant 0 : i32
    %5 = arith.cmpi ne, %4, %c0_i32_1 : i32
    scf.if %5 {
      %c0 = arith.constant 0 : index
      %c0_6 = arith.constant 0 : index
      %c0_7 = arith.constant 0 : index
      %12 = vector.load %arg2[%c0, %c0_6, %c0_7] : memref<1x8x128xf32, #tpu.memory_space<vmem>>, vector<1x8x128xf32>
      %13 = vector.shape_cast %12 : vector<1x8x128xf32> to vector<8x128xf32>
      %c0_8 = arith.constant 0 : index
      %c0_9 = arith.constant 0 : index
      %14 = vector.load %arg6[%c0_8, %c0_9] : memref<8x1xf32, #tpu.memory_space<vmem>>, vector<8x1xf32>
      %cst = arith.constant dense<0.000000e+00> : vector<8xf32>
      %15 = vector.multi_reduction <add>, %13, %cst [1] : vector<8x128xf32> to vector<8xf32>
      %16 = vector.shape_cast %15 : vector<8xf32> to vector<8x1xf32>
      %17 = arith.addf %14, %16 : vector<8x1xf32>
      %c0_10 = arith.constant 0 : index
      %c0_11 = arith.constant 0 : index
      %18 = vector.load %arg6[%c0_10, %c0_11] : memref<8x1xf32, #tpu.memory_space<vmem>>, vector<8x1xf32>
      tpu.vector_store %arg6[%c0_10, %c0_11], %17 {strides = array<i32>} : memref<8x1xf32, #tpu.memory_space<vmem>>, vector<8x1xf32>,
    } else {
    }
    %c2_i32_2 = arith.constant 2 : i32
    %6 = arith.cmpi eq, %arg1, %c2_i32_2 : i32
    %7 = arith.extui %6 : i1 to i32
    %c0_i32_3 = arith.constant 0 : i32
    %8 = arith.cmpi ne, %7, %c0_i32_3 : i32
    scf.if %8 {
      %c0 = arith.constant 0 : index
      %c0_6 = arith.constant 0 : index
      %c0_7 = arith.constant 0 : index
      %12 = vector.load %arg2[%c0, %c0_6, %c0_7] : memref<1x8x128xf32, #tpu.memory_space<vmem>>, vector<1x8x128xf32>
      %13 = vector.shape_cast %12 : vector<1x8x128xf32> to vector<8x128xf32>
      %14 = tpu.iota {dimensions = array<i32: 1>} : vector<1x128xi32>
      %c32_i32 = arith.constant 32 : i32
      %15 = vector.broadcast %c32_i32 : i32 to vector<1x128xi32>
      %16 = arith.cmpi slt, %14, %15 : vector<1x128xi32>
      %cst = arith.constant 0.000000e+00 : f32
      %17 = vector.broadcast %cst : f32 to vector<8x128xf32>
      %18 = vector.shape_cast %16 : vector<1x128xi1> to vector<1x128xi1>
      %19 = vector.broadcast %18 : vector<1x128xi1> to vector<8x128xi1>
      %20 = arith.select %19, %13, %17 : vector<8x128xi1>, vector<8x128xf32>
      %c0_8 = arith.constant 0 : index
      %c0_9 = arith.constant 0 : index
      %21 = vector.load %arg6[%c0_8, %c0_9] : memref<8x1xf32, #tpu.memory_space<vmem>>, vector<8x1xf32>
      %cst_10 = arith.constant dense<0.000000e+00> : vector<8xf32>
      %22 = vector.multi_reduction <add>, %20, %cst_10 [1] : vector<8x128xf32> to vector<8xf32>
      %23 = vector.shape_cast %22 : vector<8xf32> to vector<8x1xf32>
      %24 = arith.addf %21, %23 : vector<8x1xf32>
      %c0_11 = arith.constant 0 : index
      %c0_12 = arith.constant 0 : index
      %25 = vector.load %arg6[%c0_11, %c0_12] : memref<8x1xf32, #tpu.memory_space<vmem>>, vector<8x1xf32>
      tpu.vector_store %arg6[%c0_11, %c0_12], %24 {strides = array<i32>} : memref<8x1xf32, #tpu.memory_space<vmem>>, vector<8x1xf32>,
    } else {
    }
    %c2_i32_4 = arith.constant 2 : i32
    %9 = arith.cmpi eq, %arg1, %c2_i32_4 : i32
    %10 = arith.extui %9 : i1 to i32
    %c0_i32_5 = arith.constant 0 : i32
    %11 = arith.cmpi ne, %10, %c0_i32_5 : i32
    scf.if %11 {
      %c0 = arith.constant 0 : index
      %c0_6 = arith.constant 0 : index
      %12 = vector.load %arg6[%c0, %c0_6] : memref<8x1xf32, #tpu.memory_space<vmem>>, vector<8x1xf32>
      %cst = arith.constant 0.00347222225 : f32
      %13 = vector.broadcast %cst : f32 to vector<8x1xf32>
      %14 = arith.mulf %12, %13 : vector<8x1xf32>
      %c0_7 = arith.constant 0 : index
      %c0_8 = arith.constant 0 : index
      %15 = vector.load %arg3[%c0_7, %c0_8] : memref<8x128xf32, #tpu.memory_space<vmem>>, vector<8x128xf32>
      %cst_9 = arith.constant dense<0.000000e+00> : vector<1x128xf32>
      %16 = tpu.matmul %14, %15, %cst_9 {dimension_numbers = #tpu.dot_dimension_numbers<[0], [0], [1], [1], [0, 1, 1, 1], [], []>} : vector<8x1xf32>, vector<8x128xf32>, vector<1x128xf32> -> vector<1x128xf32>
      %c0_10 = arith.constant 0 : index
      %c0_11 = arith.constant 0 : index
      %17 = vector.load %arg4[%c0_10, %c0_11] : memref<1x128xf32, #tpu.memory_space<vmem>>, vector<1x128xf32>
      %18 = arith.addf %16, %17 : vector<1x128xf32>
      %c0_12 = arith.constant 0 : index
      %c0_13 = arith.constant 0 : index
      %c0_14 = arith.constant 0 : index
      %19 = vector.load %arg5[%c0_12, %c0_13, %c0_14] : memref<1x1x128xf32, #tpu.memory_space<vmem>>, vector<1x1x128xf32>
      %20 = vector.shape_cast %19 : vector<1x1x128xf32> to vector<1x128xf32>
      %21 = vector.shape_cast %18 : vector<1x128xf32> to vector<1x1x128xf32>
      tpu.vector_store %arg5[%c0_12, %c0_13, %c0_14], %21 {strides = array<i32>} : memref<1x1x128xf32, #tpu.memory_space<vmem>>, vector<1x1x128xf32>,
    } else {
    }
    return
  }
  func.func @transform_0(%arg0: i32, %arg1: i32) -> (i32, i32, i32) {
    %c0_i32 = arith.constant 0 : i32
    %c0_i32_0 = arith.constant 0 : i32
    return %arg0, %c0_i32, %arg1 : i32, i32, i32
  }
  func.func @transform_1(%arg0: i32, %arg1: i32) -> (i32, i32) {
    %c0_i32 = arith.constant 0 : i32
    %c0_i32_0 = arith.constant 0 : i32
    %c0_i32_1 = arith.constant 0 : i32
    return %c0_i32, %c0_i32_0 : i32, i32
  }
  func.func @transform_2(%arg0: i32, %arg1: i32) -> (i32, i32) {
    %c0_i32 = arith.constant 0 : i32
    %c0_i32_0 = arith.constant 0 : i32
    %c0_i32_1 = arith.constant 0 : i32
    return %c0_i32, %c0_i32_0 : i32, i32
  }
  func.func @transform_3(%arg0: i32, %arg1: i32) -> (i32, i32, i32) {
    %c0_i32 = arith.constant 0 : i32
    %c0_i32_0 = arith.constant 0 : i32
    %c0_i32_1 = arith.constant 0 : i32
    return %arg0, %c0_i32, %c0_i32_0 : i32, i32, i32
  }
}

</mosaic_0001>

<llo_original>
// kernel: tpu_custom_call.1
$region0: #{tpu_custom_call.1}
  #allocation0 [shape = 'u32[]', space=smem, size = 0x4, offset = 0x4, fixed_abs, tag = 'smem constant byte address 0x4 - core index']
  #allocation1 [shape = 'u32[144,128]{1,0:T(1,128)}', space=vmem, size = 0x12000, scoped, tag = 'internal scratch']
  #allocation2 [shape = 'f32[8,1]{1,0:T(8,128)}', space=vmem, size = 0x1000, scoped, tag = 'scratch operand']
  %s0 = inlined_call_operand.hbm [shape: f32[2,8,288], index: 0, kind: input, shape index: {}]
  %s1 = inlined_call_operand.hbm [shape: f32[8,128], index: 1, kind: input, shape index: {}]
  %s2 = inlined_call_operand.vmem [shape: f32[1,128], index: 2, kind: input, shape index: {}]
  %s3 = inlined_call_operand.hbm [shape: f32[2,1,128], index: 3, kind: output, shape index: {}]
  %s4 = sld [smem:[#allocation0]]
  $region65: #{tpu_custom_call.1} parent=0
    _
  %s6 = ssub.s32 1, %s4
  %s7 = scalar_select 0, %s6, %s4
  $region1: #{tpu_custom_call.1} parent=0
    #allocation3 [shape = 'u8[8192]{0}', space=vmem, size = 0x2000, scoped, tag = 'input window, operand 0']
    #allocation4 [shape = 's32[2]{0}', space=sflag, size = 0x8, scoped, tag = 'scoped memory for tpu_custom_call.1']
    #allocation5 [shape = 's32[2]{0}', space=sflag, size = 0x8, scoped, tag = 'scoped memory for tpu_custom_call.1']
    #allocation6 [shape = 'u8[4096]{0}', space=vmem, size = 0x1000, scoped, tag = 'input window, operand 1, single buffered']
    #allocation7 [shape = 's32[1]{0}', space=sflag, size = 0x4, scoped, tag = 'scoped memory for tpu_custom_call.1']
    #allocation8 [shape = 'u8[1024]{0}', space=vmem, size = 0x400, scoped, tag = 'output window, operand 0']
    %8 = vsyncpa [#allocation4], 0
    %s9 = scalar_lea.sflag [#allocation4], 1
    %10 = vsyncpa %s9, 0
    %11 = vsyncpa [#allocation7], 0
    %12 = vsyncpa [#allocation5], 0
    %s13 = scalar_lea.sflag [#allocation5], 1
    %14 = vsyncpa %s13, 0
    loop: start=0, step=1, limit=8
    $region2: #{tpu_custom_call.1} parent=1 // loop_pre_header
      _
    $region3: #{tpu_custom_call.1} parent=1 // loop_header
      %s16 = sphi 0, %s20
      %p17 = scmp.ge.s32.totalorder %s16, 8
      %s23 = sphi 0, %s35
      %s24 = sphi 0, %s31
      %s25 = sphi 0, %s23
      %s26 = sphi 0, %s24
      %s27 = sphi 0, %s25
      %s28 = sphi 0, %s26
      %s40 = sphi 0, %s42
      %s43 = sphi 0, %s40
      %s44 = sphi 0, %s43
      %s60 = sphi 0, %s44
      %s64 = sphi 0, %s64
      %s66 = sphi 0, %s64
      %s67 = sphi 0, %s66
      %s81 = sphi 0, %s67
      %s85 = sphi 0, %s85
      %s87 = sphi 0, %s85
      %s88 = sphi 0, %s87
      %s102 = sphi 0, %s88
      %s108 = sphi 0, %s110
      %s111 = sphi 0, %s108
      %s112 = sphi 0, %s111
      %s128 = sphi 0, %s112
    $region4: #{tpu_custom_call.1} parent=1 // loop_header_branch
      %19 = sbr.rel (%p17) target = $region8
    $region5: #{tpu_custom_call.1} parent=1 // loop_body
      %s21 = ssub.s32 %s16, 1
      %s22 = ssub.s32 %s16, 2
      %s29 = sadd.s32 1, %s24
      %p30 = scmp.ge.s32.totalorder %s29, 3
      %s31 = scalar_select %p30, 0, %s29
      %s32 = sadd.s32 1, %s23
      %s33 = scalar_select %p30, %s32, %s23
      %p34 = scmp.ge.s32.totalorder %s33, 2
      %s35 = scalar_select %p34, 0, %s33
      %s36 = ssub.s32 %s23, %s35
      %s37 = ssub.s32 %s24, %s31
      %s38 = sor.u32 %s36, %s37
      %p39 = scmp.eq.s32.totalorder %s38, 0
      %s41 = sadd.s32 %s40, 1
      %s42 = scalar_select %p39, %s40, %s41
      %p45 = pneg %p39
      %p46 = scmp.eq.s32.totalorder %s16, 5
      %p47 = por %p45, %p46
      %p48 = scmp.ne.s32.totalorder %s40, %s43
      %p49 = scmp.eq.s32.totalorder %s16, 0
      %p50 = por %p48, %p49
      %p51 = scmp.ne.s32.totalorder %s40, %s43
      %p52 = scmp.eq.s32.totalorder %s21, 5
      %p53 = por %p51, %p52
      %p54 = scmp.ne.s32.totalorder %s43, %s44
      %p55 = scmp.eq.s32.totalorder %s21, 0
      %p56 = por %p54, %p55
      %p57 = scmp.ne.s32.totalorder %s43, %s44
      %p58 = scmp.eq.s32.totalorder %s22, 5
      %p59 = por %p57, %p58
      %p61 = scmp.ne.s32.totalorder %s44, %s60
      %p62 = scmp.eq.s32.totalorder %s22, 0
      %p63 = por %p61, %p62
      %s65 = sadd.s32 %s64, 1
      %p68 = scmp.eq.s32.totalorder %s16, 5
      %p69 = scmp.ne.s32.totalorder %s64, %s66
      %p70 = scmp.eq.s32.totalorder %s16, 0
      %p71 = por %p69, %p70
      %p72 = scmp.ne.s32.totalorder %s64, %s66
      %p73 = scmp.eq.s32.totalorder %s21, 5
      %p74 = por %p72, %p73
      %p75 = scmp.ne.s32.totalorder %s66, %s67
      %p76 = scmp.eq.s32.totalorder %s21, 0
      %p77 = por %p75, %p76
      %p78 = scmp.ne.s32.totalorder %s66, %s67
      %p79 = scmp.eq.s32.totalorder %s22, 5
      %p80 = por %p78, %p79
      %p82 = scmp.ne.s32.totalorder %s67, %s81
      %p83 = scmp.eq.s32.totalorder %s22, 0
      %p84 = por %p82, %p83
      %s86 = sadd.s32 %s85, 1
      %p89 = scmp.eq.s32.totalorder %s16, 5
      %p90 = scmp.ne.s32.totalorder %s85, %s87
      %p91 = scmp.eq.s32.totalorder %s16, 0
      %p92 = por %p90, %p91
      %p93 = scmp.ne.s32.totalorder %s85, %s87
      %p94 = scmp.eq.s32.totalorder %s21, 5
      %p95 = por %p93, %p94
      %p96 = scmp.ne.s32.totalorder %s87, %s88
      %p97 = scmp.eq.s32.totalorder %s21, 0
      %p98 = por %p96, %p97
      %p99 = scmp.ne.s32.totalorder %s87, %s88
      %p100 = scmp.eq.s32.totalorder %s22, 5
      %p101 = por %p99, %p100
      %p103 = scmp.ne.s32.totalorder %s88, %s102
      %p104 = scmp.eq.s32.totalorder %s22, 0
      %p105 = por %p103, %p104
      %s106 = ssub.s32 %s23, %s35
      %p107 = scmp.eq.s32.totalorder %s106, 0
      %s109 = sadd.s32 %s108, 1
      %s110 = scalar_select %p107, %s108, %s109
      %p113 = pneg %p107
      %p114 = scmp.eq.s32.totalorder %s16, 5
      %p115 = por %p113, %p114
      %p116 = scmp.ne.s32.totalorder %s108, %s111
      %p117 = scmp.eq.s32.totalorder %s16, 0
      %p118 = por %p116, %p117
      %p119 = scmp.ne.s32.totalorder %s108, %s111
      %p120 = scmp.eq.s32.totalorder %s21, 5
      %p121 = por %p119, %p120
      %p122 = scmp.ne.s32.totalorder %s111, %s112
      %p123 = scmp.eq.s32.totalorder %s21, 0
      %p124 = por %p122, %p123
      %p125 = scmp.ne.s32.totalorder %s111, %s112
      %p126 = scmp.eq.s32.totalorder %s22, 5
      %p127 = por %p125, %p126
      %p129 = scmp.ne.s32.totalorder %s112, %s128
      %p130 = scmp.eq.s32.totalorder %s22, 0
      %p131 = por %p129, %p130
      %p132 = scmp.le.s32.totalorder 1, %s16
      %p133 = scmp.lt.s32.totalorder %s16, 7
      %p134 = pnand %p132, %p133
      %p135 = pneg %p134
      // Predicated region
      $region9: #{tpu_custom_call.1} parent=5 // pred_check
        _
      $region10: #{tpu_custom_call.1} parent=5 // pred_check_branch
        %137 = sbr.rel (%p134) target = $region12
      $region11: #{tpu_custom_call.1} parent=5 // pred_region
        %s138 = ssub.s32 %s16, 1
        // Predicated region
        $region13: #{tpu_custom_call.1} parent=11 // pred_check
          %p139 = pneg %p77
        $region14: #{tpu_custom_call.1} parent=11 // pred_check_branch
          %141 = sbr.rel (%p139) target = $region16
        $region15: #{tpu_custom_call.1} parent=11 // pred_region
          %s143 = ssub.s32 128, 128
          %144 = vsyncadd [#allocation7], %s143
          %s146 = sshll.u32 [#allocation6], 4
          %s147 = int_to_ptr.vmem [resolvable:$true] %s146
          %149 = dma.hbm_to_vmem [thread:$0]  %s1, 128, %s147, [#allocation7]
        $region16: #{tpu_custom_call.1} parent=11 // pred_fallthru
          _
        // Predicated region
        $region17: #{tpu_custom_call.1} parent=11 // pred_check
          %p150 = pneg %p98
        $region18: #{tpu_custom_call.1} parent=11 // pred_check_branch
          %152 = sbr.rel (%p150) target = $region20
        $region19: #{tpu_custom_call.1} parent=11 // pred_region
          _
        $region20: #{tpu_custom_call.1} parent=11 // pred_fallthru
          _
      $region12: #{tpu_custom_call.1} parent=5 // pred_fallthru
        _
      %p153 = scmp.lt.s32.totalorder %s16, 6
      // Predicated region
      $region21: #{tpu_custom_call.1} parent=5 // pred_check
        %p154 = pneg %p153
      $region22: #{tpu_custom_call.1} parent=5 // pred_check_branch
        %156 = sbr.rel (%p154) target = $region24
      $region23: #{tpu_custom_call.1} parent=5 // pred_region
        // Predicated region
        $region25: #{tpu_custom_call.1} parent=23 // pred_check
          %p157 = pneg %p50
        $region26: #{tpu_custom_call.1} parent=23 // pred_check_branch
          %159 = sbr.rel (%p157) target = $region28
        $region27: #{tpu_custom_call.1} parent=23 // pred_region
          %s160 = sand.u32 %s40, 1
          %s161 = scalar_lea.sflag [#allocation4], %s160
          %s162 = sand.u32 %s40, 1
          %s163 = smul.addr %s162, 8
          %s164 = scalar_lea.vmem [#allocation3], %s163
          %s166 = ssub.s32 128, 128
          %167 = vsyncadd %s161, %s166
          %s168 = smul.addr %s23, 3
          %s169 = sadd.s32 %s24, %s168
          %s170 = smul.addr %s169, 128
          %s171 = scalar_lea.hbm %s0, %s170
          %s173 = sshll.u32 %s164, 4
          %s174 = int_to_ptr.vmem [resolvable:$true] %s173
          %176 = dma.hbm_to_vmem [thread:$0]  %s171, 128, %s174, %s161
        $region28: #{tpu_custom_call.1} parent=23 // pred_fallthru
          _
      $region24: #{tpu_custom_call.1} parent=5 // pred_fallthru
        _
      %p177 = scmp.le.s32.totalorder 1, %s16
      %p178 = scmp.lt.s32.totalorder %s16, 7
      %p179 = pnand %p177, %p178
      %p180 = pneg %p179
      // Predicated region
      $region29: #{tpu_custom_call.1} parent=5 // pred_check
        _
      $region30: #{tpu_custom_call.1} parent=5 // pred_check_branch
        %182 = sbr.rel (%p179) target = $region32
      $region31: #{tpu_custom_call.1} parent=5 // pred_region
        %s183 = ssub.s32 %s16, 1
        %s184 = sand.u32 %s43, 1
        %s185 = scalar_lea.sflag [#allocation4], %s184
        %s186 = sand.u32 %s43, 1
        %s187 = smul.addr %s186, 8
        %s188 = scalar_lea.vmem [#allocation3], %s187
        // Predicated region
        $region33: #{tpu_custom_call.1} parent=31 // pred_check
          %p189 = pneg %p56
        $region34: #{tpu_custom_call.1} parent=31 // pred_check_branch
          %191 = sbr.rel (%p189) target = $region36
        $region35: #{tpu_custom_call.1} parent=31 // pred_region
          %192 = dma.done %s185, 128
        $region36: #{tpu_custom_call.1} parent=31 // pred_fallthru
          _
        // Predicated region
        $region37: #{tpu_custom_call.1} parent=31 // pred_check
          %p193 = pneg %p77
        $region38: #{tpu_custom_call.1} parent=31 // pred_check_branch
          %195 = sbr.rel (%p193) target = $region40
        $region39: #{tpu_custom_call.1} parent=31 // pred_region
          %196 = dma.done [#allocation7], 128
        $region40: #{tpu_custom_call.1} parent=31 // pred_fallthru
          _
        %s197 = sand.u32 %s43, 1
        %s198 = scalar_lea.sflag [#allocation4], %s197
        %s199 = sand.u32 %s43, 1
        %s200 = smul.addr %s199, 8
        %s201 = scalar_lea.vmem [#allocation3], %s200
        %p202 = pneg %p56
        %p203 = pneg %p53
        %p204 = pneg %p77
        %p205 = pneg %p74
        %p206 = pneg %p98
        %p207 = pneg %p95
        %p208 = pneg %p124
        %p209 = pneg %p121
        %s210 = sand.u32 %s111, 1
        %s211 = scalar_lea.sflag [#allocation5], %s210
        %s212 = sand.u32 %s111, 1
        %s213 = scalar_lea.vmem [#allocation8], %s212
        %p214 = scmp.eq.s32.totalorder %s26, 0
        // Predicated region
        $region41: #{tpu_custom_call.1} parent=31 // pred_check
          %p215 = pneg %p214
        $region42: #{tpu_custom_call.1} parent=31 // pred_check_branch
          %217 = sbr.rel (%p215) target = $region44
        $region43: #{tpu_custom_call.1} parent=31 // pred_region
          %vm218 = vcmask 7168
          %219 = vst.msk [vmem:[#allocation2] sm:$0xff] %vm218, 0.0
        $region44: #{tpu_custom_call.1} parent=31 // pred_fallthru
          _
        %p220 = scmp.ne.s32.totalorder %s26, 2
        // Predicated region
        $region45: #{tpu_custom_call.1} parent=31 // pred_check
          %p221 = pneg %p220
        $region46: #{tpu_custom_call.1} parent=31 // pred_check_branch
          %223 = sbr.rel (%p221) target = $region48
        $region47: #{tpu_custom_call.1} parent=31 // pred_region
          %v224 = vld [vmem:[%s188] sm:$0xff]
          %v225 = vld [vmem:[#allocation2] sm:$0xff]
          %226 = vadd.xlane.f32.xlu0 %v224
          %v227 = vpop.xlane.xlu0 %226
          %v228 = vadd.f32 %v225, %v227
          %vm229 = vcmask 7168
          %230 = vst.msk [vmem:[#allocation2] sm:$0xff] %vm229, %v228
        $region48: #{tpu_custom_call.1} parent=31 // pred_fallthru
          _
        %p231 = scmp.eq.s32.totalorder %s26, 2
        // Predicated region
        $region49: #{tpu_custom_call.1} parent=31 // pred_check
          %p232 = pneg %p231
        $region50: #{tpu_custom_call.1} parent=31 // pred_check_branch
          %234 = sbr.rel (%p232) target = $region52
        $region51: #{tpu_custom_call.1} parent=31 // pred_region
          %v235 = vld [vmem:[%s188] sm:$0xff]
          %v236 = vlaneseq
          %v237 = vand.u32 %v236, 127
          %vm238 = vcmp.lt.s32.totalorder %v237, 32
          %v239 = vsel %vm238, 1, 0
          %vm240 = vcmp.eq.s32.totalorder %v239, 1
          %v241 = vsel %vm240, %v235, 0.0
          %v242 = vld [vmem:[#allocation2] sm:$0xff]
          %243 = vadd.xlane.f32.xlu0 %v241
          %v244 = vpop.xlane.xlu0 %243
          %v245 = vadd.f32 %v242, %v244
          %vm246 = vcmask 7168
          %247 = vst.msk [vmem:[#allocation2] sm:$0xff] %vm246, %v245
          %v248 = vld [vmem:[#allocation2] sm:$0xff]
          %v249 = vmul.f32 %v248, 0.0034722222
          %v250 = vld [vmem:[#allocation6] sm:$0xff]
          %v251 = vld [vmem:[%s2] sm:$0x1]
          %252 = vxpose.xlu0.b32.start [1/16] %v249, 128
          %253 = vxpose.xlu0.b32.cont [2/16] 0.0, 128
          %254 = vxpose.xlu0.b32.cont [3/16] 0.0, 128
          %255 = vxpose.xlu0.b32.cont [4/16] 0.0, 128
          %256 = vxpose.xlu0.b32.cont [5/16] 0.0, 128
          %257 = vxpose.xlu0.b32.cont [6/16] 0.0, 128
          %258 = vxpose.xlu0.b32.cont [7/16] 0.0, 128
          %259 = vxpose.xlu0.b32.cont [8/16] 0.0, 128
          %260 = vxpose.xlu0.b32.cont [9/16] 0.0, 128
          %261 = vxpose.xlu0.b32.cont [10/16] 0.0, 128
          %262 = vxpose.xlu0.b32.cont [11/16] 0.0, 128
          %263 = vxpose.xlu0.b32.cont [12/16] 0.0, 128
          %264 = vxpose.xlu0.b32.cont [13/16] 0.0, 128
          %265 = vxpose.xlu0.b32.cont [14/16] 0.0, 128
          %266 = vxpose.xlu0.b32.cont [15/16] 0.0, 128
          %267 = vxpose.xlu0.b32.end [16/16] 0.0, 128
          %v268 = vpop.trf.xlu0
          %v269 = vpop.trf.xlu0
          %v270 = vpop.trf.xlu0
          %v271 = vpop.trf.xlu0
          %v272 = vpop.trf.xlu0
          %v273 = vpop.trf.xlu0
          %v274 = vpop.trf.xlu0
          %v275 = vpop.trf.xlu0
          %v276 = vpop.trf.xlu0
          %v277 = vpop.trf.xlu0
          %v278 = vpop.trf.xlu0
          %v279 = vpop.trf.xlu0
          %v280 = vpop.trf.xlu0
          %v281 = vpop.trf.xlu0
          %v282 = vpop.trf.xlu0
          %v283 = vpop.trf.xlu0
          %vm284 = vcmask 64512
          %v286 = vsel %vm284, %v268, 0
          %288 = vmatprep.subr.mxu0 0.0
          %289 = vmatpush1.msra.mxu0 0.0
          %290 = vmatprep.subr.mxu0 0.0
          %291 = vmatpush1.msra.mxu0 0.0
          %292 = vmatprep.subr.mxu0 0.0
          %293 = vmatpush1.msra.mxu0 0.0
          %294 = vmatprep.subr.mxu0 0.0
          %295 = vmatpush1.msra.mxu0 0.0
          %296 = vmatprep.subr.mxu0 0.0
          %297 = vmatpush1.msra.mxu0 0.0
          %298 = vmatprep.subr.mxu0 0.0
          %299 = vmatpush1.msra.mxu0 0.0
          %300 = vmatprep.subr.mxu0 0.0
          %301 = vmatpush1.msra.mxu0 0.0
          %302 = vmatprep.subr.mxu0 0.0
          %303 = vmatpush1.msra.mxu0 0.0
          %304 = vmatprep.subr.mxu0 0.0
          %305 = vmatpush1.msra.mxu0 0.0
          %306 = vmatprep.subr.mxu0 0.0
          %307 = vmatpush1.msra.mxu0 0.0
          %308 = vmatprep.subr.mxu0 0.0
          %309 = vmatpush1.msra.mxu0 0.0
          %310 = vmatprep.subr.mxu0 0.0
          %311 = vmatpush1.msra.mxu0 0.0
          %312 = vmatprep.subr.mxu0 0.0
          %313 = vmatpush1.msra.mxu0 0.0
          %314 = vmatprep.subr.mxu0 0.0
          %315 = vmatpush1.msra.mxu0 0.0
          %316 = vmatprep.subr.mxu0 0.0
          %317 = vmatpush1.msra.mxu0 0.0
          %318 = vmatprep.subr.mxu0 0.0
          %319 = vmatpush1.msra.mxu0 %v250
          %320 = vmatprep.subr.mxu0 0.0
          %321 = vmatpush2.msra.mxu0 0.0
          %322 = vmatprep.subr.mxu0 0.0
          %323 = vmatpush2.msra.mxu0 0.0
          %324 = vmatprep.subr.mxu0 0.0
          %325 = vmatpush2.msra.mxu0 0.0
          %326 = vmatprep.subr.mxu0 0.0
          %327 = vmatpush2.msra.mxu0 0.0
          %328 = vmatprep.subr.mxu0 0.0
          %329 = vmatpush2.msra.mxu0 0.0
          %330 = vmatprep.subr.mxu0 0.0
          %331 = vmatpush2.msra.mxu0 0.0
          %332 = vmatprep.subr.mxu0 0.0
          %333 = vmatpush2.msra.mxu0 0.0
          %334 = vmatprep.subr.mxu0 0.0
          %335 = vmatpush2.msra.mxu0 0.0
          %336 = vmatprep.subr.mxu0 0.0
          %337 = vmatpush2.msra.mxu0 0.0
          %338 = vmatprep.subr.mxu0 0.0
          %339 = vmatpush2.msra.mxu0 0.0
          %340 = vmatprep.subr.mxu0 0.0
          %341 = vmatpush2.msra.mxu0 0.0
          %342 = vmatprep.subr.mxu0 0.0
          %343 = vmatpush2.msra.mxu0 0.0
          %344 = vmatprep.subr.mxu0 0.0
          %345 = vmatpush2.msra.mxu0 0.0
          %346 = vmatprep.subr.mxu0 0.0
          %347 = vmatpush2.msra.mxu0 0.0
          %348 = vmatprep.subr.mxu0 0.0
          %349 = vmatpush2.msra.mxu0 0.0
          %350 = vmatprep.subr.mxu0 0.0
          %351 = vmatpush2.msra.mxu0 0.0
          %352 = vmatprep.mubr.f32.mxu0 0.0
          %353 = vmatmul.mubr.f32.gmra.mxu0 %v286
          %v354 = vpop.f32.mrf.mxu0
          %v355 = vadd.f32 %v251, %v354
          %v356 = vpop.f32.mrf.mxu0
          %357 = vdwg.mxu0
          %358 = vst [vmem:[%s213] sm:$0x1] %v355
        $region52: #{tpu_custom_call.1} parent=31 // pred_fallthru
          _
        %s359 = sand.u32 %s111, 1
        %s360 = scalar_lea.sflag [#allocation5], %s359
        %s361 = sand.u32 %s111, 1
        %s362 = scalar_lea.vmem [#allocation8], %s361
        // Predicated region
        $region53: #{tpu_custom_call.1} parent=31 // pred_check
          %p363 = pneg %p121
        $region54: #{tpu_custom_call.1} parent=31 // pred_check_branch
          %365 = sbr.rel (%p363) target = $region56
        $region55: #{tpu_custom_call.1} parent=31 // pred_region
          %s367 = ssub.s32 16, 16
          %368 = vsyncadd %s360, %s367
          %s369 = smul.addr %s25, 16
          %s370 = scalar_lea.hbm %s3, %s369
          %s372 = sshll.u32 %s362, 4
          %s373 = int_to_ptr.vmem [resolvable:$true] %s372
          %375 = dma.vmem_to_hbm [thread:$0]  %s373, 16, %s370, %s360
        $region56: #{tpu_custom_call.1} parent=31 // pred_fallthru
          _
      $region32: #{tpu_custom_call.1} parent=5 // pred_fallthru
        _
      %p376 = scmp.le.s32.totalorder 2, %s16
      // Predicated region
      $region57: #{tpu_custom_call.1} parent=5 // pred_check
        %p377 = pneg %p376
      $region58: #{tpu_custom_call.1} parent=5 // pred_check_branch
        %379 = sbr.rel (%p377) target = $region60
      $region59: #{tpu_custom_call.1} parent=5 // pred_region
        %s380 = ssub.s32 %s16, 2
        // Predicated region
        $region61: #{tpu_custom_call.1} parent=59 // pred_check
          %p381 = pneg %p127
        $region62: #{tpu_custom_call.1} parent=59 // pred_check_branch
          %383 = sbr.rel (%p381) target = $region64
        $region63: #{tpu_custom_call.1} parent=59 // pred_region
          %s384 = sand.u32 %s112, 1
          %s385 = scalar_lea.sflag [#allocation5], %s384
          %s386 = sand.u32 %s112, 1
          %s387 = scalar_lea.vmem [#allocation8], %s386
          %388 = dma.done %s385, 16
        $region64: #{tpu_custom_call.1} parent=59 // pred_fallthru
          _
      $region60: #{tpu_custom_call.1} parent=5 // pred_fallthru
        _
    $region6: #{tpu_custom_call.1} parent=1 // loop_footer
      %s20 = sadd.s32 1, %s16
    $region7: #{tpu_custom_call.1} parent=1 // loop_footer_branch
      %15 = sbr.rel target = $region3
    $region8: #{tpu_custom_call.1} parent=1 // loop_exit
      _
    %389 = vsyncpa [#allocation4], 1
    %s390 = scalar_lea.sflag [#allocation4], 1
    %391 = vsyncpa %s390, 1
    %392 = vsyncpa [#allocation7], 1
    %393 = vsyncpa [#allocation5], 1
    %s394 = scalar_lea.sflag [#allocation5], 1
    %395 = vsyncpa %s394, 1

</llo_original>
